<compile_context>
chip_gen: v7x
topology: tpu7x:2x2x1
jax: 0.10.0
libtpu: 0.0.40
codegen_flags: <defaults>
</compile_context>

<pallas_src>
import functools
from typing import NamedTuple

import jax
import jax.numpy as jnp
from jax.experimental import pallas as pl
from jax.experimental.pallas import tpu as pltpu

LN_EPS = 1e-5
# Packed column-vector order in the vector section of the slab:
#   wp, bp, g1, be1, b1, g2, be2, b2, g3, be3, b3
_N_VEC = 11


class PackedDPBParams(NamedTuple):
    slab: jax.Array        # (max_dim + 2*pos_dim + num_heads, slab_cols) f32
    pos_dim: int
    num_heads: int


def _ln_relu_linear_t(h, g, be, w_t, b):
    """LayerNorm (feature axis = 0) -> ReLU -> Linear, transposed layout.

    h:    (in_dim, TL)      activations, features on sublanes, L on lanes
    g,be: (in_dim, 1)       LayerNorm affine params (column vectors)
    w_t:  (out_dim, in_dim) transposed Linear weight (so out = w_t @ h)
    b:    (out_dim, 1)      Linear bias (column vector)
    Returns (out_dim, TL), all f32.
    """
    in_dim = h.shape[0]
    inv_n = 1.0 / in_dim
    # One-pass statistics: var = E[x^2] - mean^2 (halves the XLU reductions).
    mu = jnp.sum(h, axis=0, keepdims=True) * inv_n            # (1, TL)
    ex2 = jnp.sum(h * h, axis=0, keepdims=True) * inv_n       # (1, TL)
    var = ex2 - mu * mu
    hn = (h - mu) * jax.lax.rsqrt(var + LN_EPS)
    hn = hn * g + be
    hn = jnp.maximum(hn, 0.0)
    if in_dim <= 32:
        # Tiny K: unrolled lane-dense VPU broadcast FMAs beat a degenerate
        # MXU pass on every TPU generation (and give exact f32 math).
        out = w_t[:, 0:1] * hn[0:1, :]
        for k in range(1, in_dim):
            out = out + w_t[:, k:k + 1] * hn[k:k + 1, :]
    else:
        # TODO(synk): MXU fallback for pos_dim > 32 is functionally correct but
        # untested at the shapes used here.
        out = jnp.dot(w_t, hn, preferred_element_type=jnp.float32)
    return out + b


def dpb_kernel(x_ref, slab_ref, out_ref, *,
               residual: bool, pos_dim: int, num_heads: int):
    x = x_ref[...].astype(jnp.float32)          # (1, TL)  -- biases, L on lanes
    slab = slab_ref[...].astype(jnp.float32)    # (max_dim + 2*pd + nh, cols)

    max_dim = max(pos_dim, num_heads)
    vec = slab[:max_dim, :]                     # column-vector section
    w = slab[max_dim:, :pos_dim]                # (2*pos_dim + num_heads, pos_dim)

    def col(j, rows):
        return vec[:rows, j:j + 1]              # (rows, 1) column vector

    wp = col(0, pos_dim)
    bp = col(1, pos_dim)
    g1, be1, b1 = col(2, pos_dim), col(3, pos_dim), col(4, pos_dim)
    g2, be2, b2 = col(5, pos_dim), col(6, pos_dim), col(7, pos_dim)
    g3, be3 = col(8, pos_dim), col(9, pos_dim)
    b3 = col(10, num_heads)

    w1_t = w[0:pos_dim, :]                               # (pos_dim, pos_dim)
    w2_t = w[pos_dim:2 * pos_dim, :]                     # (pos_dim, pos_dim)
    w3_t = w[2 * pos_dim:2 * pos_dim + num_heads, :]     # (num_heads, pos_dim)

    # pos_proj: Linear(1 -> pos_dim) as a pure VPU broadcast outer product.
    pos = wp * x + bp                                    # (pos_dim, TL)

    h1 = _ln_relu_linear_t(pos, g1, be1, w1_t, b1)
    pos = pos + h1 if residual else h1

    h2 = _ln_relu_linear_t(pos, g2, be2, w2_t, b2)
    pos = pos + h2 if residual else h2

    # pos3: LayerNorm -> ReLU -> Linear(pos_dim -> num_heads); no residual.
    out = _ln_relu_linear_t(pos, g3, be3, w3_t, b3)      # (num_heads, TL)
    out_ref[...] = out.astype(out_ref.dtype)


def pack_params(p) -> PackedDPBParams:
    """Pack the 16 tiny tensors into ONE f32 slab.

    Call this ONCE when the parameters are created and reuse the result for
    every dynamic_pos_bias() call — the packing ops are invariant per params.
    """
    pos_dim = p["wp"].shape[1]
    num_heads = p["w3"].shape[1]
    max_dim = max(pos_dim, num_heads)
    slab_cols = max(_N_VEC, pos_dim)

    def colv(v):
        c = v.reshape(-1, 1).astype(jnp.float32)
        if c.shape[0] < max_dim:
            c = jnp.pad(c, ((0, max_dim - c.shape[0]), (0, 0)))
        return c

    vec = jnp.concatenate(
        [colv(p[k]) for k in
         ("wp", "bp", "g1", "be1", "b1", "g2", "be2", "b2", "g3", "be3", "b3")],
        axis=1)                                            # (max_dim, _N_VEC)
    if vec.shape[1] < slab_cols:
        vec = jnp.pad(vec, ((0, 0), (0, slab_cols - vec.shape[1])))

    w = jnp.concatenate(
        [p["w1"].T, p["w2"].T, p["w3"].T], axis=0).astype(jnp.float32)
    if w.shape[1] < slab_cols:
        w = jnp.pad(w, ((0, 0), (0, slab_cols - w.shape[1])))

    slab = jnp.concatenate([vec, w], axis=0)               # single param slab
    return PackedDPBParams(slab=slab, pos_dim=pos_dim, num_heads=num_heads)


def _pick_tile_l(L: int) -> int:
    """Grid split only on multi-TensorCore parts (v7x) and only for huge L.

    v5e/v6e have a single TensorCore: a multi-step 'parallel' grid is just a
    serial loop that adds ~0.35 us per step — never split there.
    """
    multi_tc = False
    try:
        kind = jax.devices()[0].device_kind.lower()
        multi_tc = ("v7" in kind) or ("7x" in kind)
    except Exception:
        multi_tc = False
    if multi_tc and L >= 16384 and L % 256 == 0:
        return L // 2
    return L


def dynamic_pos_bias(biases, params, *, residual: bool,
                     out_dtype=jnp.float32, transpose_output: bool = False,
                     tile_l=None):
    """Compute the DynamicPosBias table.

    biases: (L, 1) float32 relative-position scalars.
    params: a PackedDPBParams (preferred; pack once via pack_params) or the
            raw parameter dict (packed on the fly — slower per call).
    Returns (num_heads, L) by default (lane-dense layout, no extra transpose
    launch).  Pass transpose_output=True for the PyTorch (L, num_heads) layout.
    """
    if not isinstance(params, PackedDPBParams):
        params = pack_params(params)
    slab, pos_dim, num_heads = params.slab, params.pos_dim, params.num_heads

    L, one = biases.shape
    assert one == 1

    if tile_l is None:
        tile_l = _pick_tile_l(L)
    assert tile_l == L or (L % tile_l == 0 and tile_l % 128 == 0), (
        "tile_l must equal L or be a multiple of 128 dividing L")

    # (L,1) -> (1,L): contiguous reshape (bitcast-level), L lands on lanes.
    x = biases.reshape(1, L).astype(jnp.float32)

    kernel = functools.partial(
        dpb_kernel, residual=residual, pos_dim=pos_dim, num_heads=num_heads)

    grid_spec = pltpu.PrefetchScalarGridSpec(
        num_scalar_prefetch=0,
        grid=(L // tile_l,),
        in_specs=[
            pl.BlockSpec((1, tile_l), lambda i: (0, i)),                  # biases (1, L)
            pl.BlockSpec(slab.shape, lambda i: (0, 0)),                   # single param slab
        ],
        out_specs=pl.BlockSpec((num_heads, tile_l), lambda i: (0, i)),    # lane-dense
    )

    out_t = pl.pallas_call(
        kernel,
        out_shape=jax.ShapeDtypeStruct((num_heads, L), out_dtype),
        grid_spec=grid_spec,
        compiler_params=pltpu.CompilerParams(
            dimension_semantics=("parallel",)),
    )(x, slab)

    if transpose_output:
        # Compatibility layout only — costs an extra launch + HBM round trip.
        return out_t.T                                     # (L, num_heads)
    return out_t                                           # (num_heads, L)


def dynamic_pos_bias_ref(biases, p, *, residual: bool):
    """Pure-JAX reference matching the PyTorch forward (returns (L, num_heads))."""
    def ln_relu_lin(h, g, be, w, b):
        mu = jnp.mean(h, axis=-1, keepdims=True)
        var = jnp.mean((h - mu) ** 2, axis=-1, keepdims=True)
        hn = (h - mu) / jnp.sqrt(var + LN_EPS) * g + be
        return jnp.maximum(hn, 0.0) @ w + b

    pos = biases @ p["wp"] + p["bp"]
    if residual:
        pos = pos + ln_relu_lin(pos, p["g1"], p["be1"], p["w1"], p["b1"])
        pos = pos + ln_relu_lin(pos, p["g2"], p["be2"], p["w2"], p["b2"])
        pos = ln_relu_lin(pos, p["g3"], p["be3"], p["w3"], p["b3"])
    else:
        pos = ln_relu_lin(pos, p["g1"], p["be1"], p["w1"], p["b1"])
        pos = ln_relu_lin(pos, p["g2"], p["be2"], p["w2"], p["b2"])
        pos = ln_relu_lin(pos, p["g3"], p["be3"], p["w3"], p["b3"])
    return pos


def init_params(key, dim, num_heads):
    """Deterministic synthetic init matching PyTorch module shapes."""
    pos_dim = dim // 4
    ks = jax.random.split(key, 8)
    u = lambda k, shape, s: (jax.random.uniform(k, shape, jnp.float32) - 0.5) * 2 * s
    return {
        # pos_proj: Linear(1, pos_dim)   (weights stored as (in, out))
        "wp": u(ks[0], (1, pos_dim), 1.0),
        "bp": u(ks[1], (1, pos_dim), 1.0),
        # pos1: LayerNorm(pos_dim), Linear(pos_dim, pos_dim)
        "g1": jnp.ones((1, pos_dim), jnp.float32),
        "be1": jnp.zeros((1, pos_dim), jnp.float32),
        "w1": u(ks[2], (pos_dim, pos_dim), pos_dim ** -0.5),
        "b1": u(ks[3], (1, pos_dim), pos_dim ** -0.5),
        # pos2
        "g2": jnp.ones((1, pos_dim), jnp.float32),
        "be2": jnp.zeros((1, pos_dim), jnp.float32),
        "w2": u(ks[4], (pos_dim, pos_dim), pos_dim ** -0.5),
        "b2": u(ks[5], (1, pos_dim), pos_dim ** -0.5),
        # pos3: LayerNorm(pos_dim), Linear(pos_dim, num_heads)
        "g3": jnp.ones((1, pos_dim), jnp.float32),
        "be3": jnp.zeros((1, pos_dim), jnp.float32),
        "w3": u(ks[6], (pos_dim, num_heads), pos_dim ** -0.5),
        "b3": u(ks[7], (1, num_heads), pos_dim ** -0.5),
    }


if __name__ == "__main__":
    dim = 32          # -> pos_dim = 8
    num_heads = 4
    L = 128           # number of relative-position scalars
    residual = True

    key = jax.random.PRNGKey(0)
    kp, kb = jax.random.split(key)
    params = init_params(kp, dim, num_heads)
    biases = jax.random.uniform(kb, (L, 1), jnp.float32, -8.0, 8.0)

    # Pack the 16 tiny tensors ONCE; reuse for every call.
    packed = pack_params(params)
    packed = jax.tree_util.tree_map(
        lambda v: jax.block_until_ready(v) if isinstance(v, jax.Array) else v,
        packed)

    # Fast path: (num_heads, L), no output transpose launch.
    out = dynamic_pos_bias(biases, packed, residual=residual)
    out = jax.block_until_ready(out)

    ref = dynamic_pos_bias_ref(biases, params, residual=residual)  # (L, num_heads)
    assert out.shape == (num_heads, L)
    assert jnp.allclose(out, ref.T, atol=1e-4, rtol=1e-4), "mismatch vs reference"

    # Non-residual path.
    out_nr = jax.block_until_ready(
        dynamic_pos_bias(biases, packed, residual=False))
    ref_nr = dynamic_pos_bias_ref(biases, params, residual=False)
    assert jnp.allclose(out_nr, ref_nr.T, atol=1e-4, rtol=1e-4), "mismatch (no residual)"

    # PyTorch-layout compatibility path (explicit opt-in).
    out_pt = jax.block_until_ready(
        dynamic_pos_bias(biases, packed, residual=residual, transpose_output=True))
    assert out_pt.shape == (L, num_heads)
    assert jnp.allclose(out_pt, ref, atol=1e-4, rtol=1e-4), "mismatch (pt layout)"

    print("KERNEL_OK")
</pallas_src>

<mosaic_0001>
module attributes {stable_mosaic.version = 11 : i64} {
  func.func @dpb_kernel(%arg0: i32, %arg1: memref<1x128xf32, #tpu.memory_space<vmem>>, %arg2: memref<28x11xf32, #tpu.memory_space<vmem>>, %arg3: memref<4x128xf32, #tpu.memory_space<vmem>>) attributes {dimension_semantics = [#tpu.dimension_semantics<parallel>], iteration_bounds = array<i64: 1>, scalar_prefetch = 0 : i64, scratch_operands = 0 : i64, tpu.core_type = #tpu.core_type<tc>, window_params = [{transform_indices = @transform_0, window_bounds = array<i64: 1, 128>}, {pipeline_mode = #tpu.pipeline_mode<synchronous>, transform_indices = @transform_1, window_bounds = array<i64: 28, 11>}, {transform_indices = @transform_2, window_bounds = array<i64: 4, 128>}]} {
    %c0 = arith.constant 0 : index
    %c0_0 = arith.constant 0 : index
    %0 = vector.load %arg1[%c0, %c0_0] : memref<1x128xf32, #tpu.memory_space<vmem>>, vector<1x128xf32>
    %c0_1 = arith.constant 0 : index
    %c0_2 = arith.constant 0 : index
    %1 = vector.load %arg2[%c0_1, %c0_2] : memref<28x11xf32, #tpu.memory_space<vmem>>, vector<28x11xf32>
    %2 = vector.extract_strided_slice %1 {offsets = [0, 0], sizes = [8, 11], strides = [1, 1]} : vector<28x11xf32> to vector<8x11xf32>
    %3 = vector.extract_strided_slice %1 {offsets = [8, 0], sizes = [20, 8], strides = [1, 1]} : vector<28x11xf32> to vector<20x8xf32>
    %4 = vector.extract_strided_slice %2 {offsets = [0, 0], sizes = [8, 1], strides = [1, 1]} : vector<8x11xf32> to vector<8x1xf32>
    %5 = vector.extract_strided_slice %2 {offsets = [0, 1], sizes = [8, 1], strides = [1, 1]} : vector<8x11xf32> to vector<8x1xf32>
    %6 = vector.extract_strided_slice %2 {offsets = [0, 2], sizes = [8, 1], strides = [1, 1]} : vector<8x11xf32> to vector<8x1xf32>
    %7 = vector.extract_strided_slice %2 {offsets = [0, 3], sizes = [8, 1], strides = [1, 1]} : vector<8x11xf32> to vector<8x1xf32>
    %8 = vector.extract_strided_slice %2 {offsets = [0, 4], sizes = [8, 1], strides = [1, 1]} : vector<8x11xf32> to vector<8x1xf32>
    %9 = vector.extract_strided_slice %2 {offsets = [0, 5], sizes = [8, 1], strides = [1, 1]} : vector<8x11xf32> to vector<8x1xf32>
    %10 = vector.extract_strided_slice %2 {offsets = [0, 6], sizes = [8, 1], strides = [1, 1]} : vector<8x11xf32> to vector<8x1xf32>
    %11 = vector.extract_strided_slice %2 {offsets = [0, 7], sizes = [8, 1], strides = [1, 1]} : vector<8x11xf32> to vector<8x1xf32>
    %12 = vector.extract_strided_slice %2 {offsets = [0, 8], sizes = [8, 1], strides = [1, 1]} : vector<8x11xf32> to vector<8x1xf32>
    %13 = vector.extract_strided_slice %2 {offsets = [0, 9], sizes = [8, 1], strides = [1, 1]} : vector<8x11xf32> to vector<8x1xf32>
    %14 = vector.extract_strided_slice %2 {offsets = [0, 10], sizes = [4, 1], strides = [1, 1]} : vector<8x11xf32> to vector<4x1xf32>
    %15 = vector.extract_strided_slice %3 {offsets = [0, 0], sizes = [8, 8], strides = [1, 1]} : vector<20x8xf32> to vector<8x8xf32>
    %16 = vector.extract_strided_slice %3 {offsets = [8, 0], sizes = [8, 8], strides = [1, 1]} : vector<20x8xf32> to vector<8x8xf32>
    %17 = vector.extract_strided_slice %3 {offsets = [16, 0], sizes = [4, 8], strides = [1, 1]} : vector<20x8xf32> to vector<4x8xf32>
    %18 = vector.broadcast %4 : vector<8x1xf32> to vector<8x128xf32>
    %19 = vector.broadcast %0 : vector<1x128xf32> to vector<8x128xf32>
    %20 = arith.mulf %18, %19 : vector<8x128xf32>
    %21 = vector.broadcast %5 : vector<8x1xf32> to vector<8x128xf32>
    %22 = arith.addf %20, %21 : vector<8x128xf32>
    %cst = arith.constant dense<0.000000e+00> : vector<128xf32>
    %23 = vector.multi_reduction <add>, %22, %cst [0] : vector<8x128xf32> to vector<128xf32>
    %24 = vector.shape_cast %23 : vector<128xf32> to vector<1x128xf32>
    %cst_3 = arith.constant 1.250000e-01 : f32
    %25 = vector.broadcast %cst_3 : f32 to vector<1x128xf32>
    %26 = arith.mulf %24, %25 : vector<1x128xf32>
    %27 = arith.mulf %22, %22 : vector<8x128xf32>
    %cst_4 = arith.constant dense<0.000000e+00> : vector<128xf32>
    %28 = vector.multi_reduction <add>, %27, %cst_4 [0] : vector<8x128xf32> to vector<128xf32>
    %29 = vector.shape_cast %28 : vector<128xf32> to vector<1x128xf32>
    %cst_5 = arith.constant 1.250000e-01 : f32
    %30 = vector.broadcast %cst_5 : f32 to vector<1x128xf32>
    %31 = arith.mulf %29, %30 : vector<1x128xf32>
    %32 = arith.mulf %26, %26 : vector<1x128xf32>
    %33 = arith.subf %31, %32 : vector<1x128xf32>
    %34 = vector.broadcast %26 : vector<1x128xf32> to vector<8x128xf32>
    %35 = arith.subf %22, %34 : vector<8x128xf32>
    %cst_6 = arith.constant 9.99999974E-6 : f32
    %36 = vector.broadcast %cst_6 : f32 to vector<1x128xf32>
    %37 = arith.addf %33, %36 : vector<1x128xf32>
    %38 = math.rsqrt %37 : vector<1x128xf32>
    %39 = vector.broadcast %38 : vector<1x128xf32> to vector<8x128xf32>
    %40 = arith.mulf %35, %39 : vector<8x128xf32>
    %41 = vector.broadcast %6 : vector<8x1xf32> to vector<8x128xf32>
    %42 = arith.mulf %40, %41 : vector<8x128xf32>
    %43 = vector.broadcast %7 : vector<8x1xf32> to vector<8x128xf32>
    %44 = arith.addf %42, %43 : vector<8x128xf32>
    %cst_7 = arith.constant 0.000000e+00 : f32
    %45 = vector.broadcast %cst_7 : f32 to vector<8x128xf32>
    %46 = arith.maximumf %44, %45 : vector<8x128xf32>
    %47 = vector.extract_strided_slice %15 {offsets = [0, 0], sizes = [8, 1], strides = [1, 1]} : vector<8x8xf32> to vector<8x1xf32>
    %48 = vector.extract_strided_slice %46 {offsets = [0, 0], sizes = [1, 128], strides = [1, 1]} : vector<8x128xf32> to vector<1x128xf32>
    %49 = vector.broadcast %47 : vector<8x1xf32> to vector<8x128xf32>
    %50 = vector.broadcast %48 : vector<1x128xf32> to vector<8x128xf32>
    %51 = arith.mulf %49, %50 : vector<8x128xf32>
    %52 = vector.extract_strided_slice %15 {offsets = [0, 1], sizes = [8, 1], strides = [1, 1]} : vector<8x8xf32> to vector<8x1xf32>
    %53 = vector.extract_strided_slice %46 {offsets = [1, 0], sizes = [1, 128], strides = [1, 1]} : vector<8x128xf32> to vector<1x128xf32>
    %54 = vector.broadcast %52 : vector<8x1xf32> to vector<8x128xf32>
    %55 = vector.broadcast %53 : vector<1x128xf32> to vector<8x128xf32>
    %56 = arith.mulf %54, %55 : vector<8x128xf32>
    %57 = arith.addf %51, %56 : vector<8x128xf32>
    %58 = vector.extract_strided_slice %15 {offsets = [0, 2], sizes = [8, 1], strides = [1, 1]} : vector<8x8xf32> to vector<8x1xf32>
    %59 = vector.extract_strided_slice %46 {offsets = [2, 0], sizes = [1, 128], strides = [1, 1]} : vector<8x128xf32> to vector<1x128xf32>
    %60 = vector.broadcast %58 : vector<8x1xf32> to vector<8x128xf32>
    %61 = vector.broadcast %59 : vector<1x128xf32> to vector<8x128xf32>
    %62 = arith.mulf %60, %61 : vector<8x128xf32>
    %63 = arith.addf %57, %62 : vector<8x128xf32>
    %64 = vector.extract_strided_slice %15 {offsets = [0, 3], sizes = [8, 1], strides = [1, 1]} : vector<8x8xf32> to vector<8x1xf32>
    %65 = vector.extract_strided_slice %46 {offsets = [3, 0], sizes = [1, 128], strides = [1, 1]} : vector<8x128xf32> to vector<1x128xf32>
    %66 = vector.broadcast %64 : vector<8x1xf32> to vector<8x128xf32>
    %67 = vector.broadcast %65 : vector<1x128xf32> to vector<8x128xf32>
    %68 = arith.mulf %66, %67 : vector<8x128xf32>
    %69 = arith.addf %63, %68 : vector<8x128xf32>
    %70 = vector.extract_strided_slice %15 {offsets = [0, 4], sizes = [8, 1], strides = [1, 1]} : vector<8x8xf32> to vector<8x1xf32>
    %71 = vector.extract_strided_slice %46 {offsets = [4, 0], sizes = [1, 128], strides = [1, 1]} : vector<8x128xf32> to vector<1x128xf32>
    %72 = vector.broadcast %70 : vector<8x1xf32> to vector<8x128xf32>
    %73 = vector.broadcast %71 : vector<1x128xf32> to vector<8x128xf32>
    %74 = arith.mulf %72, %73 : vector<8x128xf32>
    %75 = arith.addf %69, %74 : vector<8x128xf32>
    %76 = vector.extract_strided_slice %15 {offsets = [0, 5], sizes = [8, 1], strides = [1, 1]} : vector<8x8xf32> to vector<8x1xf32>
    %77 = vector.extract_strided_slice %46 {offsets = [5, 0], sizes = [1, 128], strides = [1, 1]} : vector<8x128xf32> to vector<1x128xf32>
    %78 = vector.broadcast %76 : vector<8x1xf32> to vector<8x128xf32>
    %79 = vector.broadcast %77 : vector<1x128xf32> to vector<8x128xf32>
    %80 = arith.mulf %78, %79 : vector<8x128xf32>
    %81 = arith.addf %75, %80 : vector<8x128xf32>
    %82 = vector.extract_strided_slice %15 {offsets = [0, 6], sizes = [8, 1], strides = [1, 1]} : vector<8x8xf32> to vector<8x1xf32>
    %83 = vector.extract_strided_slice %46 {offsets = [6, 0], sizes = [1, 128], strides = [1, 1]} : vector<8x128xf32> to vector<1x128xf32>
    %84 = vector.broadcast %82 : vector<8x1xf32> to vector<8x128xf32>
    %85 = vector.broadcast %83 : vector<1x128xf32> to vector<8x128xf32>
    %86 = arith.mulf %84, %85 : vector<8x128xf32>
    %87 = arith.addf %81, %86 : vector<8x128xf32>
    %88 = vector.extract_strided_slice %15 {offsets = [0, 7], sizes = [8, 1], strides = [1, 1]} : vector<8x8xf32> to vector<8x1xf32>
    %89 = vector.extract_strided_slice %46 {offsets = [7, 0], sizes = [1, 128], strides = [1, 1]} : vector<8x128xf32> to vector<1x128xf32>
    %90 = vector.broadcast %88 : vector<8x1xf32> to vector<8x128xf32>
    %91 = vector.broadcast %89 : vector<1x128xf32> to vector<8x128xf32>
    %92 = arith.mulf %90, %91 : vector<8x128xf32>
    %93 = arith.addf %87, %92 : vector<8x128xf32>
    %94 = vector.broadcast %8 : vector<8x1xf32> to vector<8x128xf32>
    %95 = arith.addf %93, %94 : vector<8x128xf32>
    %96 = arith.addf %22, %95 : vector<8x128xf32>
    %cst_8 = arith.constant dense<0.000000e+00> : vector<128xf32>
    %97 = vector.multi_reduction <add>, %96, %cst_8 [0] : vector<8x128xf32> to vector<128xf32>
    %98 = vector.shape_cast %97 : vector<128xf32> to vector<1x128xf32>
    %cst_9 = arith.constant 1.250000e-01 : f32
    %99 = vector.broadcast %cst_9 : f32 to vector<1x128xf32>
    %100 = arith.mulf %98, %99 : vector<1x128xf32>
    %101 = arith.mulf %96, %96 : vector<8x128xf32>
    %cst_10 = arith.constant dense<0.000000e+00> : vector<128xf32>
    %102 = vector.multi_reduction <add>, %101, %cst_10 [0] : vector<8x128xf32> to vector<128xf32>
    %103 = vector.shape_cast %102 : vector<128xf32> to vector<1x128xf32>
    %cst_11 = arith.constant 1.250000e-01 : f32
    %104 = vector.broadcast %cst_11 : f32 to vector<1x128xf32>
    %105 = arith.mulf %103, %104 : vector<1x128xf32>
    %106 = arith.mulf %100, %100 : vector<1x128xf32>
    %107 = arith.subf %105, %106 : vector<1x128xf32>
    %108 = vector.broadcast %100 : vector<1x128xf32> to vector<8x128xf32>
    %109 = arith.subf %96, %108 : vector<8x128xf32>
    %cst_12 = arith.constant 9.99999974E-6 : f32
    %110 = vector.broadcast %cst_12 : f32 to vector<1x128xf32>
    %111 = arith.addf %107, %110 : vector<1x128xf32>
    %112 = math.rsqrt %111 : vector<1x128xf32>
    %113 = vector.broadcast %112 : vector<1x128xf32> to vector<8x128xf32>
    %114 = arith.mulf %109, %113 : vector<8x128xf32>
    %115 = vector.broadcast %9 : vector<8x1xf32> to vector<8x128xf32>
    %116 = arith.mulf %114, %115 : vector<8x128xf32>
    %117 = vector.broadcast %10 : vector<8x1xf32> to vector<8x128xf32>
    %118 = arith.addf %116, %117 : vector<8x128xf32>
    %cst_13 = arith.constant 0.000000e+00 : f32
    %119 = vector.broadcast %cst_13 : f32 to vector<8x128xf32>
    %120 = arith.maximumf %118, %119 : vector<8x128xf32>
    %121 = vector.extract_strided_slice %16 {offsets = [0, 0], sizes = [8, 1], strides = [1, 1]} : vector<8x8xf32> to vector<8x1xf32>
    %122 = vector.extract_strided_slice %120 {offsets = [0, 0], sizes = [1, 128], strides = [1, 1]} : vector<8x128xf32> to vector<1x128xf32>
    %123 = vector.broadcast %121 : vector<8x1xf32> to vector<8x128xf32>
    %124 = vector.broadcast %122 : vector<1x128xf32> to vector<8x128xf32>
    %125 = arith.mulf %123, %124 : vector<8x128xf32>
    %126 = vector.extract_strided_slice %16 {offsets = [0, 1], sizes = [8, 1], strides = [1, 1]} : vector<8x8xf32> to vector<8x1xf32>
    %127 = vector.extract_strided_slice %120 {offsets = [1, 0], sizes = [1, 128], strides = [1, 1]} : vector<8x128xf32> to vector<1x128xf32>
    %128 = vector.broadcast %126 : vector<8x1xf32> to vector<8x128xf32>
    %129 = vector.broadcast %127 : vector<1x128xf32> to vector<8x128xf32>
    %130 = arith.mulf %128, %129 : vector<8x128xf32>
    %131 = arith.addf %125, %130 : vector<8x128xf32>
    %132 = vector.extract_strided_slice %16 {offsets = [0, 2], sizes = [8, 1], strides = [1, 1]} : vector<8x8xf32> to vector<8x1xf32>
    %133 = vector.extract_strided_slice %120 {offsets = [2, 0], sizes = [1, 128], strides = [1, 1]} : vector<8x128xf32> to vector<1x128xf32>
    %134 = vector.broadcast %132 : vector<8x1xf32> to vector<8x128xf32>
    %135 = vector.broadcast %133 : vector<1x128xf32> to vector<8x128xf32>
    %136 = arith.mulf %134, %135 : vector<8x128xf32>
    %137 = arith.addf %131, %136 : vector<8x128xf32>
    %138 = vector.extract_strided_slice %16 {offsets = [0, 3], sizes = [8, 1], strides = [1, 1]} : vector<8x8xf32> to vector<8x1xf32>
    %139 = vector.extract_strided_slice %120 {offsets = [3, 0], sizes = [1, 128], strides = [1, 1]} : vector<8x128xf32> to vector<1x128xf32>
    %140 = vector.broadcast %138 : vector<8x1xf32> to vector<8x128xf32>
    %141 = vector.broadcast %139 : vector<1x128xf32> to vector<8x128xf32>
    %142 = arith.mulf %140, %141 : vector<8x128xf32>
    %143 = arith.addf %137, %142 : vector<8x128xf32>
    %144 = vector.extract_strided_slice %16 {offsets = [0, 4], sizes = [8, 1], strides = [1, 1]} : vector<8x8xf32> to vector<8x1xf32>
    %145 = vector.extract_strided_slice %120 {offsets = [4, 0], sizes = [1, 128], strides = [1, 1]} : vector<8x128xf32> to vector<1x128xf32>
    %146 = vector.broadcast %144 : vector<8x1xf32> to vector<8x128xf32>
    %147 = vector.broadcast %145 : vector<1x128xf32> to vector<8x128xf32>
    %148 = arith.mulf %146, %147 : vector<8x128xf32>
    %149 = arith.addf %143, %148 : vector<8x128xf32>
    %150 = vector.extract_strided_slice %16 {offsets = [0, 5], sizes = [8, 1], strides = [1, 1]} : vector<8x8xf32> to vector<8x1xf32>
    %151 = vector.extract_strided_slice %120 {offsets = [5, 0], sizes = [1, 128], strides = [1, 1]} : vector<8x128xf32> to vector<1x128xf32>
    %152 = vector.broadcast %150 : vector<8x1xf32> to vector<8x128xf32>
    %153 = vector.broadcast %151 : vector<1x128xf32> to vector<8x128xf32>
    %154 = arith.mulf %152, %153 : vector<8x128xf32>
    %155 = arith.addf %149, %154 : vector<8x128xf32>
    %156 = vector.extract_strided_slice %16 {offsets = [0, 6], sizes = [8, 1], strides = [1, 1]} : vector<8x8xf32> to vector<8x1xf32>
    %157 = vector.extract_strided_slice %120 {offsets = [6, 0], sizes = [1, 128], strides = [1, 1]} : vector<8x128xf32> to vector<1x128xf32>
    %158 = vector.broadcast %156 : vector<8x1xf32> to vector<8x128xf32>
    %159 = vector.broadcast %157 : vector<1x128xf32> to vector<8x128xf32>
    %160 = arith.mulf %158, %159 : vector<8x128xf32>
    %161 = arith.addf %155, %160 : vector<8x128xf32>
    %162 = vector.extract_strided_slice %16 {offsets = [0, 7], sizes = [8, 1], strides = [1, 1]} : vector<8x8xf32> to vector<8x1xf32>
    %163 = vector.extract_strided_slice %120 {offsets = [7, 0], sizes = [1, 128], strides = [1, 1]} : vector<8x128xf32> to vector<1x128xf32>
    %164 = vector.broadcast %162 : vector<8x1xf32> to vector<8x128xf32>
    %165 = vector.broadcast %163 : vector<1x128xf32> to vector<8x128xf32>
    %166 = arith.mulf %164, %165 : vector<8x128xf32>
    %167 = arith.addf %161, %166 : vector<8x128xf32>
    %168 = vector.broadcast %11 : vector<8x1xf32> to vector<8x128xf32>
    %169 = arith.addf %167, %168 : vector<8x128xf32>
    %170 = arith.addf %96, %169 : vector<8x128xf32>
    %cst_14 = arith.constant dense<0.000000e+00> : vector<128xf32>
    %171 = vector.multi_reduction <add>, %170, %cst_14 [0] : vector<8x128xf32> to vector<128xf32>
    %172 = vector.shape_cast %171 : vector<128xf32> to vector<1x128xf32>
    %cst_15 = arith.constant 1.250000e-01 : f32
    %173 = vector.broadcast %cst_15 : f32 to vector<1x128xf32>
    %174 = arith.mulf %172, %173 : vector<1x128xf32>
    %175 = arith.mulf %170, %170 : vector<8x128xf32>
    %cst_16 = arith.constant dense<0.000000e+00> : vector<128xf32>
    %176 = vector.multi_reduction <add>, %175, %cst_16 [0] : vector<8x128xf32> to vector<128xf32>
    %177 = vector.shape_cast %176 : vector<128xf32> to vector<1x128xf32>
    %cst_17 = arith.constant 1.250000e-01 : f32
    %178 = vector.broadcast %cst_17 : f32 to vector<1x128xf32>
    %179 = arith.mulf %177, %178 : vector<1x128xf32>
    %180 = arith.mulf %174, %174 : vector<1x128xf32>
    %181 = arith.subf %179, %180 : vector<1x128xf32>
    %182 = vector.broadcast %174 : vector<1x128xf32> to vector<8x128xf32>
    %183 = arith.subf %170, %182 : vector<8x128xf32>
    %cst_18 = arith.constant 9.99999974E-6 : f32
    %184 = vector.broadcast %cst_18 : f32 to vector<1x128xf32>
    %185 = arith.addf %181, %184 : vector<1x128xf32>
    %186 = math.rsqrt %185 : vector<1x128xf32>
    %187 = vector.broadcast %186 : vector<1x128xf32> to vector<8x128xf32>
    %188 = arith.mulf %183, %187 : vector<8x128xf32>
    %189 = vector.broadcast %12 : vector<8x1xf32> to vector<8x128xf32>
    %190 = arith.mulf %188, %189 : vector<8x128xf32>
    %191 = vector.broadcast %13 : vector<8x1xf32> to vector<8x128xf32>
    %192 = arith.addf %190, %191 : vector<8x128xf32>
    %cst_19 = arith.constant 0.000000e+00 : f32
    %193 = vector.broadcast %cst_19 : f32 to vector<8x128xf32>
    %194 = arith.maximumf %192, %193 : vector<8x128xf32>
    %195 = vector.extract_strided_slice %17 {offsets = [0, 0], sizes = [4, 1], strides = [1, 1]} : vector<4x8xf32> to vector<4x1xf32>
    %196 = vector.extract_strided_slice %194 {offsets = [0, 0], sizes = [1, 128], strides = [1, 1]} : vector<8x128xf32> to vector<1x128xf32>
    %197 = vector.broadcast %195 : vector<4x1xf32> to vector<4x128xf32>
    %198 = vector.broadcast %196 : vector<1x128xf32> to vector<4x128xf32>
    %199 = arith.mulf %197, %198 : vector<4x128xf32>
    %200 = vector.extract_strided_slice %17 {offsets = [0, 1], sizes = [4, 1], strides = [1, 1]} : vector<4x8xf32> to vector<4x1xf32>
    %201 = vector.extract_strided_slice %194 {offsets = [1, 0], sizes = [1, 128], strides = [1, 1]} : vector<8x128xf32> to vector<1x128xf32>
    %202 = vector.broadcast %200 : vector<4x1xf32> to vector<4x128xf32>
    %203 = vector.broadcast %201 : vector<1x128xf32> to vector<4x128xf32>
    %204 = arith.mulf %202, %203 : vector<4x128xf32>
    %205 = arith.addf %199, %204 : vector<4x128xf32>
    %206 = vector.extract_strided_slice %17 {offsets = [0, 2], sizes = [4, 1], strides = [1, 1]} : vector<4x8xf32> to vector<4x1xf32>
    %207 = vector.extract_strided_slice %194 {offsets = [2, 0], sizes = [1, 128], strides = [1, 1]} : vector<8x128xf32> to vector<1x128xf32>
    %208 = vector.broadcast %206 : vector<4x1xf32> to vector<4x128xf32>
    %209 = vector.broadcast %207 : vector<1x128xf32> to vector<4x128xf32>
    %210 = arith.mulf %208, %209 : vector<4x128xf32>
    %211 = arith.addf %205, %210 : vector<4x128xf32>
    %212 = vector.extract_strided_slice %17 {offsets = [0, 3], sizes = [4, 1], strides = [1, 1]} : vector<4x8xf32> to vector<4x1xf32>
    %213 = vector.extract_strided_slice %194 {offsets = [3, 0], sizes = [1, 128], strides = [1, 1]} : vector<8x128xf32> to vector<1x128xf32>
    %214 = vector.broadcast %212 : vector<4x1xf32> to vector<4x128xf32>
    %215 = vector.broadcast %213 : vector<1x128xf32> to vector<4x128xf32>
    %216 = arith.mulf %214, %215 : vector<4x128xf32>
    %217 = arith.addf %211, %216 : vector<4x128xf32>
    %218 = vector.extract_strided_slice %17 {offsets = [0, 4], sizes = [4, 1], strides = [1, 1]} : vector<4x8xf32> to vector<4x1xf32>
    %219 = vector.extract_strided_slice %194 {offsets = [4, 0], sizes = [1, 128], strides = [1, 1]} : vector<8x128xf32> to vector<1x128xf32>
    %220 = vector.broadcast %218 : vector<4x1xf32> to vector<4x128xf32>
    %221 = vector.broadcast %219 : vector<1x128xf32> to vector<4x128xf32>
    %222 = arith.mulf %220, %221 : vector<4x128xf32>
    %223 = arith.addf %217, %222 : vector<4x128xf32>
    %224 = vector.extract_strided_slice %17 {offsets = [0, 5], sizes = [4, 1], strides = [1, 1]} : vector<4x8xf32> to vector<4x1xf32>
    %225 = vector.extract_strided_slice %194 {offsets = [5, 0], sizes = [1, 128], strides = [1, 1]} : vector<8x128xf32> to vector<1x128xf32>
    %226 = vector.broadcast %224 : vector<4x1xf32> to vector<4x128xf32>
    %227 = vector.broadcast %225 : vector<1x128xf32> to vector<4x128xf32>
    %228 = arith.mulf %226, %227 : vector<4x128xf32>
    %229 = arith.addf %223, %228 : vector<4x128xf32>
    %230 = vector.extract_strided_slice %17 {offsets = [0, 6], sizes = [4, 1], strides = [1, 1]} : vector<4x8xf32> to vector<4x1xf32>
    %231 = vector.extract_strided_slice %194 {offsets = [6, 0], sizes = [1, 128], strides = [1, 1]} : vector<8x128xf32> to vector<1x128xf32>
    %232 = vector.broadcast %230 : vector<4x1xf32> to vector<4x128xf32>
    %233 = vector.broadcast %231 : vector<1x128xf32> to vector<4x128xf32>
    %234 = arith.mulf %232, %233 : vector<4x128xf32>
    %235 = arith.addf %229, %234 : vector<4x128xf32>
    %236 = vector.extract_strided_slice %17 {offsets = [0, 7], sizes = [4, 1], strides = [1, 1]} : vector<4x8xf32> to vector<4x1xf32>
    %237 = vector.extract_strided_slice %194 {offsets = [7, 0], sizes = [1, 128], strides = [1, 1]} : vector<8x128xf32> to vector<1x128xf32>
    %238 = vector.broadcast %236 : vector<4x1xf32> to vector<4x128xf32>
    %239 = vector.broadcast %237 : vector<1x128xf32> to vector<4x128xf32>
    %240 = arith.mulf %238, %239 : vector<4x128xf32>
    %241 = arith.addf %235, %240 : vector<4x128xf32>
    %242 = vector.broadcast %14 : vector<4x1xf32> to vector<4x128xf32>
    %243 = arith.addf %241, %242 : vector<4x128xf32>
    %c0_20 = arith.constant 0 : index
    %c0_21 = arith.constant 0 : index
    %244 = vector.load %arg3[%c0_20, %c0_21] : memref<4x128xf32, #tpu.memory_space<vmem>>, vector<4x128xf32>
    tpu.vector_store %arg3[%c0_20, %c0_21], %243 {strides = array<i32>} : memref<4x128xf32, #tpu.memory_space<vmem>>, vector<4x128xf32>,
    return
  }
  func.func @transform_0(%arg0: i32) -> (i32, i32) {
    %c0_i32 = arith.constant 0 : i32
    %c0_i32_0 = arith.constant 0 : i32
    return %c0_i32, %arg0 : i32, i32
  }
  func.func @transform_1(%arg0: i32) -> (i32, i32) {
    %c0_i32 = arith.constant 0 : i32
    %c0_i32_0 = arith.constant 0 : i32
    %c0_i32_1 = arith.constant 0 : i32
    return %c0_i32, %c0_i32_0 : i32, i32
  }
  func.func @transform_2(%arg0: i32) -> (i32, i32) {
    %c0_i32 = arith.constant 0 : i32
    %c0_i32_0 = arith.constant 0 : i32
    return %c0_i32, %arg0 : i32, i32
  }
}

</mosaic_0001>

<llo_original>
// kernel: tpu_custom_call.1
$region0: #{tpu_custom_call.1}
  #allocation0 [shape = 'u32[]', space=smem, size = 0x4, offset = 0x4, fixed_abs, tag = 'smem constant byte address 0x4 - core index']
  #allocation1 [shape = 'u32[144,128]{1,0:T(1,128)}', space=vmem, size = 0x12000, scoped, tag = 'internal scratch']
  %s0 = inlined_call_operand.vmem [shape: f32[1,128], index: 0, kind: input, shape index: {}]
  %s1 = inlined_call_operand.vmem [shape: f32[28,11], index: 1, kind: input, shape index: {}]
  %s2 = inlined_call_operand.hbm [shape: f32[4,128], index: 2, kind: output, shape index: {}]
  %s3 = sld [smem:[#allocation0]]
  $region18: #{tpu_custom_call.1} parent=0
    _
  %s5 = ssub.s32 1, %s3
  %s6 = scalar_select 0, %s5, %s3
  $region1: #{tpu_custom_call.1} parent=0
    #allocation2 [shape = 'u8[2048]{0}', space=vmem, size = 0x800, scoped, tag = 'output window, operand 0, single buffered']
    #allocation3 [shape = 's32[1]{0}', space=sflag, size = 0x4, scoped, tag = 'scoped memory for tpu_custom_call.1']
    %7 = vsyncpa [#allocation3], 0
    // Predicated region
    $region2: #{tpu_custom_call.1} parent=1 // pred_check
      _
    $region3: #{tpu_custom_call.1} parent=1 // pred_check_branch
      %9 = sbr.rel (0) target = $region5
    $region4: #{tpu_custom_call.1} parent=1 // pred_region
      _
    $region5: #{tpu_custom_call.1} parent=1 // pred_fallthru
      _
    // Predicated region
    $region6: #{tpu_custom_call.1} parent=1 // pred_check
      _
    $region7: #{tpu_custom_call.1} parent=1 // pred_check_branch
      %11 = sbr.rel (0) target = $region9
    $region8: #{tpu_custom_call.1} parent=1 // pred_region
      _
    $region9: #{tpu_custom_call.1} parent=1 // pred_fallthru
      _
    %v12 = vld [vmem:[%s0] sm:$0x1]
    %v13 = vld [vmem:[%s1] sm:$0xff]
    %v14 = vld [vmem:[%s1 + $0x8] sm:$0xff]
    %v15 = vld [vmem:[%s1 + $0x10] sm:$0xff]
    %v16 = vld [vmem:[%s1 + $0x18] sm:$0xf]
    %18 = vset.pattern.permute.xlu0 0
    %19 = vperm.xlu0 %18, %v13
    %v20 = vpop.permute.xlu0 %19
    %v23 = vlaneseq
    %v24 = vshrl.u32 %v23, 7
    %v25 = vsub.s32 0, %v24
    %v26 = vrot.slane %v12, %v25
    %v28 = vmul.f32 %v20, %v26
    %29 = vset.pattern.permute.xlu0 1
    %30 = vperm.xlu0 %29, %v13
    %v31 = vpop.permute.xlu0 %30
    %v33 = vadd.f32 %v28, %v31
    %v34 = vrot.slane %v33, 4
    %v35 = vadd.f32 %v33, %v34
    %v36 = vrot.slane %v35, 2
    %v37 = vadd.f32 %v35, %v36
    %v38 = vrot.slane %v37, 1
    %v39 = vadd.f32 %v37, %v38
    %v40 = vmul.f32 %v39, 0.125
    %v41 = vmul.f32 %v33, %v33
    %v42 = vrot.slane %v41, 4
    %v43 = vadd.f32 %v41, %v42
    %v44 = vrot.slane %v43, 2
    %v45 = vadd.f32 %v43, %v44
    %v46 = vrot.slane %v45, 1
    %v47 = vadd.f32 %v45, %v46
    %v48 = vmul.f32 %v47, 0.125
    %v49 = vmul.f32 %v40, %v40
    %v50 = vsub.f32 %v48, %v49
    %v51 = vsub.f32 %v33, %v40
    %v52 = vadd.f32 %v50, 1e-05
    %v53 = vrsqrt.pop %v52
    %v54 = vmul.f32 %v51, %v53
    %55 = vset.pattern.permute.xlu0 2
    %56 = vperm.xlu0 %55, %v13
    %v57 = vpop.permute.xlu0 %56
    %v59 = vmul.f32 %v54, %v57
    %60 = vset.pattern.permute.xlu0 3
    %61 = vperm.xlu0 %60, %v13
    %v62 = vpop.permute.xlu0 %61
    %v64 = vadd.f32 %v59, %v62
    %v65 = vmax.f32 %v64, 0.0
    %67 = vset.pattern.permute.xlu0 0
    %68 = vperm.xlu0 %67, %v14
    %v69 = vpop.permute.xlu0 %68
    %v71 = vlaneseq
    %v72 = vshrl.u32 %v71, 7
    %v73 = vsub.s32 0, %v72
    %v74 = vrot.slane %v65, %v73
    %v75 = vmul.f32 %v69, %v74
    %76 = vset.pattern.permute.xlu0 1
    %77 = vperm.xlu0 %76, %v14
    %v78 = vpop.permute.xlu0 %77
    %v80 = vlaneseq
    %v81 = vshrl.u32 %v80, 7
    %v82 = vsub.s32 1, %v81
    %v83 = vrot.slane %v65, %v82
    %v84 = vmul.f32 %v78, %v83
    %v85 = vadd.f32 %v75, %v84
    %86 = vset.pattern.permute.xlu0 2
    %87 = vperm.xlu0 %86, %v14
    %v88 = vpop.permute.xlu0 %87
    %v90 = vlaneseq
    %v91 = vshrl.u32 %v90, 7
    %v92 = vsub.s32 2, %v91
    %v93 = vrot.slane %v65, %v92
    %v94 = vmul.f32 %v88, %v93
    %v95 = vadd.f32 %v85, %v94
    %96 = vset.pattern.permute.xlu0 3
    %97 = vperm.xlu0 %96, %v14
    %v98 = vpop.permute.xlu0 %97
    %v100 = vlaneseq
    %v101 = vshrl.u32 %v100, 7
    %v102 = vsub.s32 3, %v101
    %v103 = vrot.slane %v65, %v102
    %v104 = vmul.f32 %v98, %v103
    %v105 = vadd.f32 %v95, %v104
    %106 = vset.pattern.permute.xlu0 4
    %107 = vperm.xlu0 %106, %v14
    %v108 = vpop.permute.xlu0 %107
    %v110 = vlaneseq
    %v111 = vshrl.u32 %v110, 7
    %v112 = vsub.s32 4, %v111
    %v113 = vrot.slane %v65, %v112
    %v114 = vmul.f32 %v108, %v113
    %v115 = vadd.f32 %v105, %v114
    %116 = vset.pattern.permute.xlu0 5
    %117 = vperm.xlu0 %116, %v14
    %v118 = vpop.permute.xlu0 %117
    %v120 = vlaneseq
    %v121 = vshrl.u32 %v120, 7
    %v122 = vsub.s32 5, %v121
    %v123 = vrot.slane %v65, %v122
    %v124 = vmul.f32 %v118, %v123
    %v125 = vadd.f32 %v115, %v124
    %126 = vset.pattern.permute.xlu0 6
    %127 = vperm.xlu0 %126, %v14
    %v128 = vpop.permute.xlu0 %127
    %v130 = vlaneseq
    %v131 = vshrl.u32 %v130, 7
    %v132 = vsub.s32 6, %v131
    %v133 = vrot.slane %v65, %v132
    %v134 = vmul.f32 %v128, %v133
    %v135 = vadd.f32 %v125, %v134
    %136 = vset.pattern.permute.xlu0 7
    %137 = vperm.xlu0 %136, %v14
    %v138 = vpop.permute.xlu0 %137
    %v140 = vlaneseq
    %v141 = vshrl.u32 %v140, 7
    %v142 = vsub.s32 7, %v141
    %v143 = vrot.slane %v65, %v142
    %v144 = vmul.f32 %v138, %v143
    %v145 = vadd.f32 %v135, %v144
    %146 = vset.pattern.permute.xlu0 4
    %147 = vperm.xlu0 %146, %v13
    %v148 = vpop.permute.xlu0 %147
    %v150 = vadd.f32 %v145, %v148
    %v151 = vadd.f32 %v33, %v150
    %v152 = vrot.slane %v151, 4
    %v153 = vadd.f32 %v151, %v152
    %v154 = vrot.slane %v153, 2
    %v155 = vadd.f32 %v153, %v154
    %v156 = vrot.slane %v155, 1
    %v157 = vadd.f32 %v155, %v156
    %v158 = vmul.f32 %v157, 0.125
    %v159 = vmul.f32 %v151, %v151
    %v160 = vrot.slane %v159, 4
    %v161 = vadd.f32 %v159, %v160
    %v162 = vrot.slane %v161, 2
    %v163 = vadd.f32 %v161, %v162
    %v164 = vrot.slane %v163, 1
    %v165 = vadd.f32 %v163, %v164
    %v166 = vmul.f32 %v165, 0.125
    %v167 = vmul.f32 %v158, %v158
    %v168 = vsub.f32 %v166, %v167
    %v169 = vsub.f32 %v151, %v158
    %v170 = vadd.f32 %v168, 1e-05
    %v171 = vrsqrt.pop %v170
    %v172 = vmul.f32 %v169, %v171
    %173 = vset.pattern.permute.xlu0 5
    %174 = vperm.xlu0 %173, %v13
    %v175 = vpop.permute.xlu0 %174
    %v177 = vmul.f32 %v172, %v175
    %178 = vset.pattern.permute.xlu0 6
    %179 = vperm.xlu0 %178, %v13
    %v180 = vpop.permute.xlu0 %179
    %v182 = vadd.f32 %v177, %v180
    %v183 = vmax.f32 %v182, 0.0
    %185 = vset.pattern.permute.xlu0 0
    %186 = vperm.xlu0 %185, %v15
    %v187 = vpop.permute.xlu0 %186
    %v189 = vlaneseq
    %v190 = vshrl.u32 %v189, 7
    %v191 = vsub.s32 0, %v190
    %v192 = vrot.slane %v183, %v191
    %v193 = vmul.f32 %v187, %v192
    %194 = vset.pattern.permute.xlu0 1
    %195 = vperm.xlu0 %194, %v15
    %v196 = vpop.permute.xlu0 %195
    %v198 = vlaneseq
    %v199 = vshrl.u32 %v198, 7
    %v200 = vsub.s32 1, %v199
    %v201 = vrot.slane %v183, %v200
    %v202 = vmul.f32 %v196, %v201
    %v203 = vadd.f32 %v193, %v202
    %204 = vset.pattern.permute.xlu0 2
    %205 = vperm.xlu0 %204, %v15
    %v206 = vpop.permute.xlu0 %205
    %v208 = vlaneseq
    %v209 = vshrl.u32 %v208, 7
    %v210 = vsub.s32 2, %v209
    %v211 = vrot.slane %v183, %v210
    %v212 = vmul.f32 %v206, %v211
    %v213 = vadd.f32 %v203, %v212
    %214 = vset.pattern.permute.xlu0 3
    %215 = vperm.xlu0 %214, %v15
    %v216 = vpop.permute.xlu0 %215
    %v218 = vlaneseq
    %v219 = vshrl.u32 %v218, 7
    %v220 = vsub.s32 3, %v219
    %v221 = vrot.slane %v183, %v220
    %v222 = vmul.f32 %v216, %v221
    %v223 = vadd.f32 %v213, %v222
    %224 = vset.pattern.permute.xlu0 4
    %225 = vperm.xlu0 %224, %v15
    %v226 = vpop.permute.xlu0 %225
    %v228 = vlaneseq
    %v229 = vshrl.u32 %v228, 7
    %v230 = vsub.s32 4, %v229
    %v231 = vrot.slane %v183, %v230
    %v232 = vmul.f32 %v226, %v231
    %v233 = vadd.f32 %v223, %v232
    %234 = vset.pattern.permute.xlu0 5
    %235 = vperm.xlu0 %234, %v15
    %v236 = vpop.permute.xlu0 %235
    %v238 = vlaneseq
    %v239 = vshrl.u32 %v238, 7
    %v240 = vsub.s32 5, %v239
    %v241 = vrot.slane %v183, %v240
    %v242 = vmul.f32 %v236, %v241
    %v243 = vadd.f32 %v233, %v242
    %244 = vset.pattern.permute.xlu0 6
    %245 = vperm.xlu0 %244, %v15
    %v246 = vpop.permute.xlu0 %245
    %v248 = vlaneseq
    %v249 = vshrl.u32 %v248, 7
    %v250 = vsub.s32 6, %v249
    %v251 = vrot.slane %v183, %v250
    %v252 = vmul.f32 %v246, %v251
    %v253 = vadd.f32 %v243, %v252
    %254 = vset.pattern.permute.xlu0 7
    %255 = vperm.xlu0 %254, %v15
    %v256 = vpop.permute.xlu0 %255
    %v258 = vlaneseq
    %v259 = vshrl.u32 %v258, 7
    %v260 = vsub.s32 7, %v259
    %v261 = vrot.slane %v183, %v260
    %v262 = vmul.f32 %v256, %v261
    %v263 = vadd.f32 %v253, %v262
    %264 = vset.pattern.permute.xlu0 7
    %265 = vperm.xlu0 %264, %v13
    %v266 = vpop.permute.xlu0 %265
    %v268 = vadd.f32 %v263, %v266
    %v269 = vadd.f32 %v151, %v268
    %v270 = vrot.slane %v269, 4
    %v271 = vadd.f32 %v269, %v270
    %v272 = vrot.slane %v271, 2
    %v273 = vadd.f32 %v271, %v272
    %v274 = vrot.slane %v273, 1
    %v275 = vadd.f32 %v273, %v274
    %v276 = vmul.f32 %v275, 0.125
    %v277 = vmul.f32 %v269, %v269
    %v278 = vrot.slane %v277, 4
    %v279 = vadd.f32 %v277, %v278
    %v280 = vrot.slane %v279, 2
    %v281 = vadd.f32 %v279, %v280
    %v282 = vrot.slane %v281, 1
    %v283 = vadd.f32 %v281, %v282
    %v284 = vmul.f32 %v283, 0.125
    %v285 = vmul.f32 %v276, %v276
    %v286 = vsub.f32 %v284, %v285
    %v287 = vsub.f32 %v269, %v276
    %v288 = vadd.f32 %v286, 1e-05
    %v289 = vrsqrt.pop %v288
    %v290 = vmul.f32 %v287, %v289
    %291 = vset.pattern.permute.xlu0 8
    %292 = vperm.xlu0 %291, %v13
    %v293 = vpop.permute.xlu0 %292
    %v295 = vmul.f32 %v290, %v293
    %296 = vset.pattern.permute.xlu0 9
    %297 = vperm.xlu0 %296, %v13
    %v298 = vpop.permute.xlu0 %297
    %v300 = vadd.f32 %v295, %v298
    %v301 = vmax.f32 %v300, 0.0
    %303 = vset.pattern.permute.xlu0 0
    %304 = vperm.xlu0 %303, %v16
    %v305 = vpop.permute.xlu0 %304
    %v307 = vlaneseq
    %v308 = vshrl.u32 %v307, 7
    %v309 = vsub.s32 0, %v308
    %v310 = vrot.slane %v301, %v309
    %v311 = vmul.f32 %v305, %v310
    %312 = vset.pattern.permute.xlu0 1
    %313 = vperm.xlu0 %312, %v16
    %v314 = vpop.permute.xlu0 %313
    %v316 = vlaneseq
    %v317 = vshrl.u32 %v316, 7
    %v318 = vsub.s32 1, %v317
    %v319 = vrot.slane %v301, %v318
    %v320 = vmul.f32 %v314, %v319
    %v321 = vadd.f32 %v311, %v320
    %322 = vset.pattern.permute.xlu0 2
    %323 = vperm.xlu0 %322, %v16
    %v324 = vpop.permute.xlu0 %323
    %v326 = vlaneseq
    %v327 = vshrl.u32 %v326, 7
    %v328 = vsub.s32 2, %v327
    %v329 = vrot.slane %v301, %v328
    %v330 = vmul.f32 %v324, %v329
    %v331 = vadd.f32 %v321, %v330
    %332 = vset.pattern.permute.xlu0 3
    %333 = vperm.xlu0 %332, %v16
    %v334 = vpop.permute.xlu0 %333
    %v336 = vlaneseq
    %v337 = vshrl.u32 %v336, 7
    %v338 = vsub.s32 3, %v337
    %v339 = vrot.slane %v301, %v338
    %v340 = vmul.f32 %v334, %v339
    %v341 = vadd.f32 %v331, %v340
    %342 = vset.pattern.permute.xlu0 4
    %343 = vperm.xlu0 %342, %v16
    %v344 = vpop.permute.xlu0 %343
    %v346 = vlaneseq
    %v347 = vshrl.u32 %v346, 7
    %v348 = vsub.s32 4, %v347
    %v349 = vrot.slane %v301, %v348
    %v350 = vmul.f32 %v344, %v349
    %v351 = vadd.f32 %v341, %v350
    %352 = vset.pattern.permute.xlu0 5
    %353 = vperm.xlu0 %352, %v16
    %v354 = vpop.permute.xlu0 %353
    %v356 = vlaneseq
    %v357 = vshrl.u32 %v356, 7
    %v358 = vsub.s32 5, %v357
    %v359 = vrot.slane %v301, %v358
    %v360 = vmul.f32 %v354, %v359
    %v361 = vadd.f32 %v351, %v360
    %362 = vset.pattern.permute.xlu0 6
    %363 = vperm.xlu0 %362, %v16
    %v364 = vpop.permute.xlu0 %363
    %v366 = vlaneseq
    %v367 = vshrl.u32 %v366, 7
    %v368 = vsub.s32 6, %v367
    %v369 = vrot.slane %v301, %v368
    %v370 = vmul.f32 %v364, %v369
    %v371 = vadd.f32 %v361, %v370
    %372 = vset.pattern.permute.xlu0 7
    %373 = vperm.xlu0 %372, %v16
    %v374 = vpop.permute.xlu0 %373
    %v376 = vlaneseq
    %v377 = vshrl.u32 %v376, 7
    %v378 = vsub.s32 7, %v377
    %v379 = vrot.slane %v301, %v378
    %v380 = vmul.f32 %v374, %v379
    %v381 = vadd.f32 %v371, %v380
    %382 = vset.pattern.permute.xlu0 10
    %383 = vperm.xlu0 %382, %v13
    %v384 = vpop.permute.xlu0 %383
    %v386 = vadd.f32 %v381, %v384
    %387 = vst [vmem:[#allocation2] sm:$0xf] %v386
    // Predicated region
    $region10: #{tpu_custom_call.1} parent=1 // pred_check
      _
    $region11: #{tpu_custom_call.1} parent=1 // pred_check_branch
      %389 = sbr.rel (0) target = $region13
    $region12: #{tpu_custom_call.1} parent=1 // pred_region
      %s391 = ssub.s32 64, 64
      %392 = vsyncadd [#allocation3], %s391
      %s394 = sshll.u32 [#allocation2], 4
      %s395 = int_to_ptr.vmem [resolvable:$true] %s394
      %397 = dma.vmem_to_hbm [thread:$0]  %s395, 64, %s2, [#allocation3]
    $region13: #{tpu_custom_call.1} parent=1 // pred_fallthru
      _
    // Predicated region
    $region14: #{tpu_custom_call.1} parent=1 // pred_check
      _
    $region15: #{tpu_custom_call.1} parent=1 // pred_check_branch
      %399 = sbr.rel (0) target = $region17
    $region16: #{tpu_custom_call.1} parent=1 // pred_region
      %400 = dma.done [#allocation3], 64
    $region17: #{tpu_custom_call.1} parent=1 // pred_fallthru
      _
    %401 = vsyncpa [#allocation3], 1

</llo_original>
